<compile_context>
chip_gen: v7x
topology: tpu7x:2x2x1
jax: 0.10.0
libtpu: 0.0.40
codegen_flags: <defaults>
</compile_context>

<pallas_src>
import functools

import jax
import jax.numpy as jnp
from jax import lax
from jax.experimental import pallas as pl
from jax.experimental.pallas import tpu as pltpu

LANES = 128
SUBLANES = 8
MAX_BLOCK_ROWS = 2048   # 1 MiB f32 per input tile


def _focal_loss_kernel(x_ref, t_ref, o_ref, *, pos_weight, focus_param,
                       block_rows, chunks_per_core, last_block,
                       full_rows, rem_lanes, needs_mask):
    c = pl.program_id(0)   # core-split axis ("parallel")
    j = pl.program_id(1)   # streaming/reduction axis ("arbitrary")

    @pl.when(j == 0)
    def _():
        o_ref[...] = jnp.zeros_like(o_ref)

    x = x_ref[...].astype(jnp.float32)
    t = t_ref[...].astype(jnp.float32)

    # One exp per element; derive both stable log-sigmoid pieces and the sigmoid
    # from it (PyTorch's BCEWithLogits decomposition).
    e = jnp.exp(-jnp.abs(x))
    log_sig = jnp.log1p(e)
    inv = 1.0 / (1.0 + e)
    p = jnp.where(x >= 0.0, inv, e * inv)          # sigmoid(x)

    pos_term = log_sig - jnp.minimum(x, 0.0)       # = -log(sigmoid(x))
    neg_term = jnp.maximum(x, 0.0) + log_sig       # = -log(1 - sigmoid(x))

    def _pow(base):
        fp = float(focus_param)
        if fp == int(fp) and 0 <= int(fp) <= 16:
            return lax.integer_pow(base, int(fp))  # repeated multiplies, no EUP
        return jnp.power(base, fp)                 # general (non-integer) case

    pw_t = pos_weight * t
    one_m_t = 1.0 - t

    # BCEWithLogitsLoss(pos_weight, reduction='none')
    bce = pw_t * pos_term + one_m_t * neg_term
    # focal = t*pw*(1-p)^g*(log_sig - min(x,0)) + (1-t)*p^g*(max(x,0) + log_sig)
    focal = pw_t * _pow(1.0 - p) * pos_term + one_m_t * _pow(p) * neg_term
    val = bce * focal

    def _fold(v):
        # Fold (block_rows, 128) onto the resident (8, 128) accumulator with
        # pure vreg adds; the full cross-lane/sublane reduce happens once in the
        # wrapper.
        return v.reshape(block_rows // SUBLANES, SUBLANES, LANES).sum(axis=0)

    if needs_mask:
        # The padded tail / partial last block only exists in the very last
        # block; everyone else takes the mask-free fast path.
        block_idx = c * chunks_per_core + j

        @pl.when(block_idx != last_block)
        def _():
            o_ref[...] += _fold(val)

        @pl.when(block_idx == last_block)
        def _():
            g_row = (lax.broadcasted_iota(jnp.int32, val.shape, 0)
                     + block_idx * block_rows)
            if rem_lanes:
                lane = lax.broadcasted_iota(jnp.int32, val.shape, 1)
                valid = jnp.logical_or(
                    g_row < full_rows,
                    jnp.logical_and(g_row == full_rows, lane < rem_lanes))
            else:
                valid = g_row < full_rows
            # Garbage from the padded/partial region is dropped by the select,
            # never multiplied (so NaN/Inf garbage cannot propagate).
            o_ref[...] += _fold(jnp.where(valid, val, 0.0))
    else:
        o_ref[...] += _fold(val)


def focal_loss_diffused(logits, target, focus_param=2.0, pos_weight=1.0):
    """JAX/Pallas equivalent of FocalLossDiffused.forward (mean scalar loss)."""
    assert logits.shape == target.shape
    n = logits.size

    x = logits.reshape(-1).astype(jnp.float32)
    t = target.reshape(-1).astype(jnp.float32)

    # Pad only to one (8, 128) vreg (< 1024 extra elements) so the flat array
    # reshapes to a lane-dense (rows, 128) slab with rows % 8 == 0.
    vreg = SUBLANES * LANES
    n_pad = pl.cdiv(n, vreg) * vreg
    if n_pad != n:
        x = jnp.pad(x, (0, n_pad - n))
        t = jnp.pad(t, (0, n_pad - n))

    rows = n_pad // LANES                      # multiple of 8
    X = x.reshape(rows, LANES)
    T = t.reshape(rows, LANES)

    block_rows = min(MAX_BLOCK_ROWS, rows)     # multiple of 8, never > array dim
    chunks = pl.cdiv(rows, block_rows)

    # v7x: split work across both TensorCores when it divides evenly.
    num_cores = 2 if (chunks >= 2 and chunks % 2 == 0) else 1
    chunks_per_core = chunks // num_cores
    grid = (num_cores, chunks_per_core)

    # Mask is only needed if the covered region exceeds the valid element count
    # (vreg pad and/or a partial last block).
    needs_mask = n < chunks * block_rows * LANES

    kernel = functools.partial(
        _focal_loss_kernel,
        pos_weight=float(pos_weight),
        focus_param=float(focus_param),
        block_rows=block_rows,
        chunks_per_core=chunks_per_core,
        last_block=chunks - 1,
        full_rows=n // LANES,
        rem_lanes=n % LANES,
        needs_mask=needs_mask,
    )

    def in_map(c, j, cpc=chunks_per_core):
        return (c * cpc + j, 0)

    partials = pl.pallas_call(
        kernel,
        out_shape=jax.ShapeDtypeStruct((num_cores * SUBLANES, LANES), jnp.float32),
        grid_spec=pltpu.PrefetchScalarGridSpec(
            num_scalar_prefetch=0,
            grid=grid,
            in_specs=[
                pl.BlockSpec((block_rows, LANES), in_map),
                pl.BlockSpec((block_rows, LANES), in_map),
            ],
            out_specs=pl.BlockSpec((SUBLANES, LANES), lambda c, j: (c, 0)),
        ),
        compiler_params=pltpu.CompilerParams(
            dimension_semantics=("parallel", "arbitrary")),
    )(X, T)

    return jnp.sum(partials) / jnp.float32(n)


def _reference(logits, target, focus_param=2.0, pos_weight=1.0):
    x = logits.astype(jnp.float32)
    t = target.astype(jnp.float32)
    log_sig = jnp.log1p(jnp.exp(-jnp.abs(x)))
    min_x = jnp.minimum(x, 0.0)
    max_x = jnp.maximum(x, 0.0)
    p = jax.nn.sigmoid(x)
    pos_term = log_sig - min_x
    neg_term = max_x + log_sig
    bce = pos_weight * t * pos_term + (1.0 - t) * neg_term
    focal = (t * pos_weight * (1.0 - p) ** focus_param * pos_term
             + (1.0 - t) * p ** focus_param * neg_term)
    return jnp.mean(bce * focal)


if __name__ == "__main__":
    key = jax.random.PRNGKey(0)

    # Module parameters (deterministic, from __init__ defaults).
    FOCUS_PARAM = 2.0
    POS_WEIGHT = 1.0

    # 1) Small NCHW-like shape (even tiling, no mask path).
    kx, kt, key = (*jax.random.split(key, 2), key)
    x1 = jax.random.normal(kx, (2, 4, 16, 16), dtype=jnp.float32) * 2.0
    t1 = (jax.random.uniform(kt, (2, 4, 16, 16)) > 0.5).astype(jnp.float32)
    loss1 = jax.block_until_ready(
        focal_loss_diffused(x1, t1, focus_param=FOCUS_PARAM, pos_weight=POS_WEIGHT))
    ref1 = _reference(x1, t1, focus_param=FOCUS_PARAM, pos_weight=POS_WEIGHT)
    assert jnp.allclose(loss1, ref1, rtol=1e-4, atol=1e-6), (loss1, ref1)

    # 2) Ragged shape (exercises vreg padding + tail mask path).
    kx2, kt2 = jax.random.split(jax.random.PRNGKey(1))
    x2 = jax.random.normal(kx2, (3, 5, 7, 11), dtype=jnp.float32) * 3.0
    t2 = jax.random.uniform(kt2, (3, 5, 7, 11), dtype=jnp.float32)   # diffused targets
    loss2 = jax.block_until_ready(
        focal_loss_diffused(x2, t2, focus_param=FOCUS_PARAM, pos_weight=POS_WEIGHT))
    ref2 = _reference(x2, t2, focus_param=FOCUS_PARAM, pos_weight=POS_WEIGHT)
    assert jnp.allclose(loss2, ref2, rtol=1e-4, atol=1e-6), (loss2, ref2)

    # 3) Multi-chunk shape (exercises megacore split + partial last block mask).
    kx3, kt3 = jax.random.split(jax.random.PRNGKey(2))
    x3 = jax.random.normal(kx3, (2, 8, 160, 160), dtype=jnp.float32) * 2.0
    t3 = (jax.random.uniform(kt3, (2, 8, 160, 160)) > 0.5).astype(jnp.float32)
    loss3 = jax.block_until_ready(
        focal_loss_diffused(x3, t3, focus_param=FOCUS_PARAM, pos_weight=POS_WEIGHT))
    ref3 = _reference(x3, t3, focus_param=FOCUS_PARAM, pos_weight=POS_WEIGHT)
    assert jnp.allclose(loss3, ref3, rtol=1e-4, atol=1e-6), (loss3, ref3)

    print("KERNEL_OK")
</pallas_src>

<mosaic_0001>
module attributes {stable_mosaic.version = 11 : i64} {
  func.func @_focal_loss_kernel(%arg0: i32, %arg1: i32, %arg2: memref<16x128xf32, #tpu.memory_space<vmem>>, %arg3: memref<16x128xf32, #tpu.memory_space<vmem>>, %arg4: memref<8x128xf32, #tpu.memory_space<vmem>>) attributes {dimension_semantics = [#tpu.dimension_semantics<parallel>, #tpu.dimension_semantics<arbitrary>], iteration_bounds = array<i64: 1, 1>, scalar_prefetch = 0 : i64, scratch_operands = 0 : i64, tpu.core_type = #tpu.core_type<tc>, window_params = [{transform_indices = @transform_0, window_bounds = array<i64: 16, 128>}, {transform_indices = @transform_1, window_bounds = array<i64: 16, 128>}, {transform_indices = @transform_2, window_bounds = array<i64: 8, 128>}]} {
    %c0_i32 = arith.constant 0 : i32
    %0 = arith.cmpi eq, %arg1, %c0_i32 : i32
    %1 = arith.extui %0 : i1 to i32
    %c0_i32_0 = arith.constant 0 : i32
    %2 = arith.cmpi ne, %1, %c0_i32_0 : i32
    scf.if %2 {
      %cst_17 = arith.constant 0.000000e+00 : f32
      %46 = vector.broadcast %cst_17 : f32 to vector<8x128xf32>
      %c0_18 = arith.constant 0 : index
      %c0_19 = arith.constant 0 : index
      %47 = vector.load %arg4[%c0_18, %c0_19] : memref<8x128xf32, #tpu.memory_space<vmem>>, vector<8x128xf32>
      tpu.vector_store %arg4[%c0_18, %c0_19], %46 {strides = array<i32>} : memref<8x128xf32, #tpu.memory_space<vmem>>, vector<8x128xf32>,
    } else {
    }
    %c0 = arith.constant 0 : index
    %c0_1 = arith.constant 0 : index
    %3 = vector.load %arg2[%c0, %c0_1] : memref<16x128xf32, #tpu.memory_space<vmem>>, vector<16x128xf32>
    %c0_2 = arith.constant 0 : index
    %c0_3 = arith.constant 0 : index
    %4 = vector.load %arg3[%c0_2, %c0_3] : memref<16x128xf32, #tpu.memory_space<vmem>>, vector<16x128xf32>
    %5 = math.absf %3 : vector<16x128xf32>
    %cst = arith.constant 0.000000e+00 : f32
    %6 = vector.broadcast %cst : f32 to vector<16x128xf32>
    %7 = arith.subf %6, %5 : vector<16x128xf32>
    %8 = math.exp %7 : vector<16x128xf32>
    %9 = math.log1p %8 : vector<16x128xf32>
    %cst_4 = arith.constant 1.000000e+00 : f32
    %10 = vector.broadcast %cst_4 : f32 to vector<16x128xf32>
    %11 = arith.addf %10, %8 : vector<16x128xf32>
    %cst_5 = arith.constant 1.000000e+00 : f32
    %12 = vector.broadcast %cst_5 : f32 to vector<16x128xf32>
    %13 = arith.divf %12, %11 : vector<16x128xf32>
    %cst_6 = arith.constant 0.000000e+00 : f32
    %14 = vector.broadcast %cst_6 : f32 to vector<16x128xf32>
    %15 = arith.cmpf oge, %3, %14 : vector<16x128xf32>
    %16 = arith.mulf %8, %13 : vector<16x128xf32>
    %17 = arith.select %15, %13, %16 : vector<16x128xi1>, vector<16x128xf32>
    %cst_7 = arith.constant 0.000000e+00 : f32
    %18 = vector.broadcast %cst_7 : f32 to vector<16x128xf32>
    %19 = arith.minimumf %3, %18 : vector<16x128xf32>
    %20 = arith.subf %9, %19 : vector<16x128xf32>
    %cst_8 = arith.constant 0.000000e+00 : f32
    %21 = vector.broadcast %cst_8 : f32 to vector<16x128xf32>
    %22 = arith.maximumf %3, %21 : vector<16x128xf32>
    %23 = arith.addf %22, %9 : vector<16x128xf32>
    %cst_9 = arith.constant 1.000000e+00 : f32
    %24 = vector.broadcast %cst_9 : f32 to vector<16x128xf32>
    %25 = arith.mulf %24, %4 : vector<16x128xf32>
    %cst_10 = arith.constant 1.000000e+00 : f32
    %26 = vector.broadcast %cst_10 : f32 to vector<16x128xf32>
    %27 = arith.subf %26, %4 : vector<16x128xf32>
    %28 = arith.mulf %25, %20 : vector<16x128xf32>
    %29 = arith.mulf %27, %23 : vector<16x128xf32>
    %30 = arith.addf %28, %29 : vector<16x128xf32>
    %cst_11 = arith.constant 1.000000e+00 : f32
    %31 = vector.broadcast %cst_11 : f32 to vector<16x128xf32>
    %32 = arith.subf %31, %17 : vector<16x128xf32>
    %33 = arith.mulf %32, %32 : vector<16x128xf32>
    %34 = arith.mulf %25, %33 : vector<16x128xf32>
    %35 = arith.mulf %34, %20 : vector<16x128xf32>
    %36 = arith.mulf %17, %17 : vector<16x128xf32>
    %37 = arith.mulf %27, %36 : vector<16x128xf32>
    %38 = arith.mulf %37, %23 : vector<16x128xf32>
    %39 = arith.addf %35, %38 : vector<16x128xf32>
    %40 = arith.mulf %30, %39 : vector<16x128xf32>
    %c0_12 = arith.constant 0 : index
    %c0_13 = arith.constant 0 : index
    %41 = vector.load %arg4[%c0_12, %c0_13] : memref<8x128xf32, #tpu.memory_space<vmem>>, vector<8x128xf32>
    %42 = vector.shape_cast %40 : vector<16x128xf32> to vector<2x8x128xf32>
    %cst_14 = arith.constant dense<0.000000e+00> : vector<8x128xf32>
    %43 = vector.multi_reduction <add>, %42, %cst_14 [0] : vector<2x8x128xf32> to vector<8x128xf32>
    %44 = arith.addf %41, %43 : vector<8x128xf32>
    %c0_15 = arith.constant 0 : index
    %c0_16 = arith.constant 0 : index
    %45 = vector.load %arg4[%c0_15, %c0_16] : memref<8x128xf32, #tpu.memory_space<vmem>>, vector<8x128xf32>
    tpu.vector_store %arg4[%c0_15, %c0_16], %44 {strides = array<i32>} : memref<8x128xf32, #tpu.memory_space<vmem>>, vector<8x128xf32>,
    return
  }
  func.func @transform_0(%arg0: i32, %arg1: i32) -> (i32, i32) {
    %c1_i32 = arith.constant 1 : i32
    %0 = arith.muli %arg0, %c1_i32 : i32
    %1 = arith.addi %0, %arg1 : i32
    %c0_i32 = arith.constant 0 : i32
    %c0_i32_0 = arith.constant 0 : i32
    return %1, %c0_i32 : i32, i32
  }
  func.func @transform_1(%arg0: i32, %arg1: i32) -> (i32, i32) {
    %c1_i32 = arith.constant 1 : i32
    %0 = arith.muli %arg0, %c1_i32 : i32
    %1 = arith.addi %0, %arg1 : i32
    %c0_i32 = arith.constant 0 : i32
    %c0_i32_0 = arith.constant 0 : i32
    return %1, %c0_i32 : i32, i32
  }
  func.func @transform_2(%arg0: i32, %arg1: i32) -> (i32, i32) {
    %c0_i32 = arith.constant 0 : i32
    %c0_i32_0 = arith.constant 0 : i32
    return %arg0, %c0_i32 : i32, i32
  }
}

</mosaic_0001>

<llo_original>
// kernel: tpu_custom_call.1
$region0: #{tpu_custom_call.1}
  #allocation0 [shape = 'u32[]', space=smem, size = 0x4, offset = 0x4, fixed_abs, tag = 'smem constant byte address 0x4 - core index']
  #allocation1 [shape = 'u32[144,128]{1,0:T(1,128)}', space=vmem, size = 0x12000, scoped, tag = 'internal scratch']
  %s0 = inlined_call_operand.hbm [shape: f32[16,128], index: 0, kind: input, shape index: {}]
  %s1 = inlined_call_operand.hbm [shape: f32[16,128], index: 1, kind: input, shape index: {}]
  %s2 = inlined_call_operand.hbm [shape: f32[8,128], index: 2, kind: output, shape index: {}]
  %s3 = sld [smem:[#allocation0]]
  $region30: #{tpu_custom_call.1} parent=0
    _
  %s5 = ssub.s32 1, %s3
  %s6 = scalar_select 0, %s5, %s3
  $region1: #{tpu_custom_call.1} parent=0
    #allocation2 [shape = 'u8[8192]{0}', space=vmem, size = 0x2000, scoped, tag = 'input window, operand 0, single buffered']
    #allocation3 [shape = 's32[1]{0}', space=sflag, size = 0x4, scoped, tag = 'scoped memory for tpu_custom_call.1']
    #allocation4 [shape = 's32[1]{0}', space=sflag, size = 0x4, scoped, tag = 'scoped memory for tpu_custom_call.1']
    #allocation5 [shape = 'u8[8192]{0}', space=vmem, size = 0x2000, scoped, tag = 'input window, operand 1, single buffered']
    #allocation6 [shape = 's32[1]{0}', space=sflag, size = 0x4, scoped, tag = 'scoped memory for tpu_custom_call.1']
    #allocation7 [shape = 'u8[4096]{0}', space=vmem, size = 0x1000, scoped, tag = 'output window, operand 0, single buffered']
    %7 = vsyncpa [#allocation3], 0
    %8 = vsyncpa [#allocation6], 0
    %9 = vsyncpa [#allocation4], 0
    // Predicated region
    $region2: #{tpu_custom_call.1} parent=1 // pred_check
      _
    $region3: #{tpu_custom_call.1} parent=1 // pred_check_branch
      %11 = sbr.rel (0) target = $region5
    $region4: #{tpu_custom_call.1} parent=1 // pred_region
      %s12 = sadd.s32 0, 0
      %s13 = smul.u32 2, %s12
      %s15 = ssub.s32 256, 256
      %16 = vsyncadd [#allocation3], %s15
      %s17 = smul.addr %s13, 128
      %s18 = scalar_lea.hbm %s0, %s17
      %s19 = sshll.u32 [#allocation2], 4
      %s20 = int_to_ptr.vmem [resolvable:$true] %s19
      %25 = dma.hbm_to_vmem [thread:$0]  %s18, 256, %s20, [#allocation3], 128, 128, 8
    $region5: #{tpu_custom_call.1} parent=1 // pred_fallthru
      _
    // Predicated region
    $region6: #{tpu_custom_call.1} parent=1 // pred_check
      _
    $region7: #{tpu_custom_call.1} parent=1 // pred_check_branch
      %27 = sbr.rel (0) target = $region9
    $region8: #{tpu_custom_call.1} parent=1 // pred_region
      %s28 = sadd.s32 0, 0
      %s29 = smul.u32 2, %s28
      %s31 = ssub.s32 256, 256
      %32 = vsyncadd [#allocation6], %s31
      %s33 = smul.addr %s29, 128
      %s34 = scalar_lea.hbm %s1, %s33
      %s35 = sshll.u32 [#allocation5], 4
      %s36 = int_to_ptr.vmem [resolvable:$true] %s35
      %41 = dma.hbm_to_vmem [thread:$0]  %s34, 256, %s36, [#allocation6], 128, 128, 8
    $region9: #{tpu_custom_call.1} parent=1 // pred_fallthru
      _
    // Predicated region
    $region10: #{tpu_custom_call.1} parent=1 // pred_check
      _
    $region11: #{tpu_custom_call.1} parent=1 // pred_check_branch
      %43 = sbr.rel (0) target = $region13
    $region12: #{tpu_custom_call.1} parent=1 // pred_region
      %44 = dma.done [#allocation3], 256
    $region13: #{tpu_custom_call.1} parent=1 // pred_fallthru
      _
    // Predicated region
    $region14: #{tpu_custom_call.1} parent=1 // pred_check
      _
    $region15: #{tpu_custom_call.1} parent=1 // pred_check_branch
      %46 = sbr.rel (0) target = $region17
    $region16: #{tpu_custom_call.1} parent=1 // pred_region
      %47 = dma.done [#allocation6], 256
    $region17: #{tpu_custom_call.1} parent=1 // pred_fallthru
      _
    %s48 = sadd.s32 0, 0
    %s49 = smul.u32 2, %s48
    %s50 = sadd.s32 0, 0
    %s51 = smul.u32 2, %s50
    %p52 = scmp.eq.s32.totalorder 0, 0
    // Predicated region
    $region18: #{tpu_custom_call.1} parent=1 // pred_check
      %p53 = pneg %p52
    $region19: #{tpu_custom_call.1} parent=1 // pred_check_branch
      %55 = sbr.rel (%p53) target = $region21
    $region20: #{tpu_custom_call.1} parent=1 // pred_region
      %56 = vst [vmem:[#allocation7] sm:$0xff] 0.0
    $region21: #{tpu_custom_call.1} parent=1 // pred_fallthru
      _
    %v57 = vld [vmem:[#allocation2] sm:$0xff]
    %v58 = vld [vmem:[#allocation2 + $0x8] sm:$0xff]
    %v59 = vld [vmem:[#allocation5] sm:$0xff]
    %v60 = vld [vmem:[#allocation5 + $0x8] sm:$0xff]
    %v61 = vand.u32 2147483647, %v57
    %v62 = vand.u32 2147483647, %v58
    %v63 = vsub.f32 0.0, %v61
    %v64 = vsub.f32 0.0, %v62
    %v65 = vmul.f32 %v63, 1.442695
    %v66 = vpow.pop %v65
    %v67 = vmul.f32 %v64, 1.442695
    %v68 = vpow.pop %v67
    %v69 = vadd.f32 %v66, 1.0
    %v70 = vlog2.pop %v69
    %v71 = vmul.f32 %v70, 0.6931472
    %v72 = vmul.f32 -0.5, %v66
    %v73 = vadd.f32 %v72, 1.0
    %v74 = vmul.f32 %v73, %v66
    %v75 = vand.u32 2147483647, %v66
    %vm76 = vcmp.lt.f32.partialorder %v75, 0.0004427343
    %v77 = vsel %vm76, %v74, %v71
    %v78 = vadd.f32 %v68, 1.0
    %v79 = vlog2.pop %v78
    %v80 = vmul.f32 %v79, 0.6931472
    %v81 = vmul.f32 -0.5, %v68
    %v82 = vadd.f32 %v81, 1.0
    %v83 = vmul.f32 %v82, %v68
    %v84 = vand.u32 2147483647, %v68
    %vm85 = vcmp.lt.f32.partialorder %v84, 0.0004427343
    %v86 = vsel %vm85, %v83, %v80
    %v87 = vadd.f32 %v66, 1.0
    %v88 = vadd.f32 %v68, 1.0
    %v89 = vrcp.pop %v87
    %v90 = vmul.f32 1.0, %v89
    %v91 = vrcp.pop %v88
    %v92 = vmul.f32 1.0, %v91
    %vm93 = vcmp.ge.f32.partialorder %v57, 0.0
    %vm94 = vcmp.ge.f32.partialorder %v58, 0.0
    %v95 = vmul.f32 %v66, %v90
    %v96 = vmul.f32 %v68, %v92
    %v97 = vsel %vm93, %v90, %v95
    %v98 = vsel %vm94, %v92, %v96
    %v99 = vmin.f32 %v57, 0.0
    %v100 = vmin.f32 %v58, 0.0
    %v101 = vsub.f32 %v77, %v99
    %v102 = vsub.f32 %v86, %v100
    %v103 = vmax.f32 %v57, 0.0
    %v104 = vmax.f32 %v58, 0.0
    %v105 = vadd.f32 %v103, %v77
    %v106 = vadd.f32 %v104, %v86
    %v107 = vsub.f32 1.0, %v59
    %v108 = vsub.f32 1.0, %v60
    %v109 = vmul.f32 %v59, %v101
    %v110 = vmul.f32 %v60, %v102
    %v111 = vmul.f32 %v107, %v105
    %v112 = vmul.f32 %v108, %v106
    %v113 = vadd.f32 %v109, %v111
    %v114 = vadd.f32 %v110, %v112
    %v115 = vsub.f32 1.0, %v97
    %v116 = vsub.f32 1.0, %v98
    %v117 = vmul.f32 %v115, %v115
    %v118 = vmul.f32 %v116, %v116
    %v119 = vmul.f32 %v59, %v117
    %v120 = vmul.f32 %v60, %v118
    %v121 = vmul.f32 %v119, %v101
    %v122 = vmul.f32 %v120, %v102
    %v123 = vmul.f32 %v97, %v97
    %v124 = vmul.f32 %v98, %v98
    %v125 = vmul.f32 %v107, %v123
    %v126 = vmul.f32 %v108, %v124
    %v127 = vmul.f32 %v125, %v105
    %v128 = vmul.f32 %v126, %v106
    %v129 = vadd.f32 %v121, %v127
    %v130 = vadd.f32 %v122, %v128
    %v131 = vmul.f32 %v113, %v129
    %v132 = vmul.f32 %v114, %v130
    %v133 = vld [vmem:[#allocation7] sm:$0xff]
    %v134 = vadd.f32 %v131, %v132
    %v135 = vadd.f32 %v133, %v134
    %136 = vst [vmem:[#allocation7] sm:$0xff] %v135
    // Predicated region
    $region22: #{tpu_custom_call.1} parent=1 // pred_check
      _
    $region23: #{tpu_custom_call.1} parent=1 // pred_check_branch
      %138 = sbr.rel (0) target = $region25
    $region24: #{tpu_custom_call.1} parent=1 // pred_region
      %s140 = ssub.s32 128, 128
      %141 = vsyncadd [#allocation4], %s140
      %s143 = sshll.u32 [#allocation7], 4
      %s144 = int_to_ptr.vmem [resolvable:$true] %s143
      %146 = dma.vmem_to_hbm [thread:$0]  %s144, 128, %s2, [#allocation4]
    $region25: #{tpu_custom_call.1} parent=1 // pred_fallthru
      _
    // Predicated region
    $region26: #{tpu_custom_call.1} parent=1 // pred_check
      _
    $region27: #{tpu_custom_call.1} parent=1 // pred_check_branch
      %148 = sbr.rel (0) target = $region29
    $region28: #{tpu_custom_call.1} parent=1 // pred_region
      %149 = dma.done [#allocation4], 128
    $region29: #{tpu_custom_call.1} parent=1 // pred_fallthru
      _
    %150 = vsyncpa [#allocation3], 1
    %151 = vsyncpa [#allocation6], 1
    %152 = vsyncpa [#allocation4], 1

</llo_original>
